<compile_context>
chip_gen: v5e
topology: v5e:2x2
jax: 0.10.0
libtpu: 0.0.40
codegen_flags: <defaults>
</compile_context>

<pallas_src>
import math

import jax
import jax.numpy as jnp
from jax.experimental import pallas as pl
from jax.experimental.pallas import tpu as pltpu


def _round_up(a, b):
    return (a + b - 1) // b * b


def _ffn_kernel(x_ref, w1_ref, b1_ref, w2_ref, b2_ref, o_ref, acc_ref):
    # x_ref : (tm, d_model_p)   bf16 row tile
    # w1_ref: (d_model_p, tn)   bf16 hidden-tile of W1
    # b1_ref: (1, tn)           f32
    # w2_ref: (tn, d_model_p)   bf16 hidden-tile of W2
    # b2_ref: (1, d_model_p)    f32
    # acc_ref:(tm, d_model_p)   f32 accumulator (scratch)
    n = pl.program_id(1)

    @pl.when(n == 0)
    def _init():
        # Fold the second bias into the accumulator init (free bias add).
        acc_ref[...] = jnp.broadcast_to(b2_ref[...], acc_ref.shape)

    h = jnp.dot(x_ref[...], w1_ref[...], preferred_element_type=jnp.float32)
    h = jnp.maximum(h + b1_ref[...], 0.0).astype(w2_ref.dtype)   # ReLU, bf16 for MXU
    acc_ref[...] += jnp.dot(h, w2_ref[...], preferred_element_type=jnp.float32)

    @pl.when(n == pl.num_programs(1) - 1)
    def _finalize():
        o_ref[...] = acc_ref[...].astype(o_ref.dtype)


def positionwise_ffn(x, w1, b1, w2, b2, *, tm=256, tn=512,
                     compute_dtype=jnp.bfloat16):
    """x: (batch, seq, d_model). Weights stored (in_features, out_features),
    i.e. the transpose of PyTorch nn.Linear. Returns (batch, seq, d_model)."""
    batch, seq, d_model = x.shape
    d_inner = w1.shape[1]
    out_dtype = x.dtype
    M = batch * seq

    # --- pad feature dims to lane-dense multiples of 128 (math stays exact).
    dmp = _round_up(d_model, 128)
    dip = _round_up(d_inner, 128)
    x2d = x.reshape(M, d_model)
    if dmp != d_model:
        pad = dmp - d_model
        x2d = jnp.pad(x2d, ((0, 0), (0, pad)))
        w1 = jnp.pad(w1, ((0, pad), (0, 0)))
        w2 = jnp.pad(w2, ((0, 0), (0, pad)))
        b2 = jnp.pad(b2, ((0, pad),))
    if dip != d_inner:
        pad = dip - d_inner
        w1 = jnp.pad(w1, ((0, 0), (0, pad)))
        b1 = jnp.pad(b1, ((0, pad),))
        w2 = jnp.pad(w2, ((0, pad), (0, 0)))

    # --- bf16 MXU inputs, f32 accumulation; biases stay f32.
    x2d = x2d.astype(compute_dtype)
    w1 = w1.astype(compute_dtype)
    w2 = w2.astype(compute_dtype)
    b1_2d = b1.reshape(1, dip).astype(jnp.float32)
    b2_2d = b2.reshape(1, dmp).astype(jnp.float32)

    # --- tile sizes (clamped for small problems; keep sublane packing).
    pack = 8 * (4 // jnp.dtype(compute_dtype).itemsize)      # 8 for f32, 16 for bf16
    tm = min(tm, _round_up(M, pack))
    tn = min(tn, dip)
    while dip % tn != 0:        # keep tn a multiple of 128 that divides dip
        tn -= 128

    grid = (pl.cdiv(M, tm), dip // tn)

    out2d = pl.pallas_call(
        _ffn_kernel,
        out_shape=jax.ShapeDtypeStruct((M, dmp), out_dtype),
        grid_spec=pltpu.PrefetchScalarGridSpec(
            num_scalar_prefetch=0,
            grid=grid,
            in_specs=[
                pl.BlockSpec((tm, dmp), lambda i, n: (i, 0)),   # x row tile
                pl.BlockSpec((dmp, tn), lambda i, n: (0, n)),   # W1 hidden tile
                pl.BlockSpec((1, tn),   lambda i, n: (0, n)),   # b1 hidden tile
                pl.BlockSpec((tn, dmp), lambda i, n: (n, 0)),   # W2 hidden tile
                pl.BlockSpec((1, dmp),  lambda i, n: (0, 0)),   # b2
            ],
            out_specs=pl.BlockSpec((tm, dmp), lambda i, n: (i, 0)),
            scratch_shapes=[pltpu.VMEM((tm, dmp), jnp.float32)],
        ),
        compiler_params=pltpu.CompilerParams(
            dimension_semantics=("parallel", "arbitrary"),
            vmem_limit_bytes=48 * 1024 * 1024,   # explicit budget; safe on v7x 64 MiB
        ),
    )(x2d, w1, b1_2d, w2, b2_2d)

    return out2d[:, :d_model].reshape(batch, seq, d_model)


def init_ffn_params(key, d_model, d_inner, dtype=jnp.float32):
    """Mirror nn.Linear default init (uniform +-1/sqrt(fan_in)).
    Weights stored (in_features, out_features) = transpose of PyTorch."""
    k1, k2, k3, k4 = jax.random.split(key, 4)
    bound1 = 1.0 / math.sqrt(d_model)
    bound2 = 1.0 / math.sqrt(d_inner)
    w1 = jax.random.uniform(k1, (d_model, d_inner), dtype, -bound1, bound1)
    b1 = jax.random.uniform(k2, (d_inner,), dtype, -bound1, bound1)
    w2 = jax.random.uniform(k3, (d_inner, d_model), dtype, -bound2, bound2)
    b2 = jax.random.uniform(k4, (d_model,), dtype, -bound2, bound2)
    return w1, b1, w2, b2


if __name__ == "__main__":
    key = jax.random.PRNGKey(0)
    kx, kp = jax.random.split(key)

    batch, seq, d_model, d_inner = 2, 8, 32, 64
    x = jax.random.normal(kx, (batch, seq, d_model), dtype=jnp.float32)
    w1, b1, w2, b2 = init_ffn_params(kp, d_model, d_inner)

    out = positionwise_ffn(x, w1, b1, w2, b2)
    out = jax.block_until_ready(out)

    # Reference in plain JAX f32 (same math as the PyTorch module).
    ref = jnp.maximum(x @ w1 + b1, 0.0) @ w2 + b2
    assert out.shape == (batch, seq, d_model)
    assert out.dtype == x.dtype
    # bf16 MXU inputs with f32 accumulation -> ~1e-2-level diff vs f32 reference.
    assert jnp.allclose(out, ref, atol=3e-2, rtol=3e-2), \
        float(jnp.max(jnp.abs(out - ref)))

    print("KERNEL_OK")
</pallas_src>

<mosaic_0001>
module attributes {stable_mosaic.version = 11 : i64} {
  func.func @_ffn_kernel(%arg0: i32, %arg1: i32, %arg2: memref<16x128xbf16, #tpu.memory_space<vmem>>, %arg3: memref<128x128xbf16, #tpu.memory_space<vmem>>, %arg4: memref<1x128xf32, #tpu.memory_space<vmem>>, %arg5: memref<128x128xbf16, #tpu.memory_space<vmem>>, %arg6: memref<1x128xf32, #tpu.memory_space<vmem>>, %arg7: memref<16x128xf32, #tpu.memory_space<vmem>>, %arg8: memref<16x128xf32, #tpu.memory_space<vmem>>) attributes {dimension_semantics = [#tpu.dimension_semantics<parallel>, #tpu.dimension_semantics<arbitrary>], iteration_bounds = array<i64: 1, 1>, scalar_prefetch = 0 : i64, scratch_operands = 1 : i64, tpu.core_type = #tpu.core_type<tc>, window_params = [{transform_indices = @transform_0, window_bounds = array<i64: 16, 128>}, {transform_indices = @transform_1, window_bounds = array<i64: 128, 128>}, {transform_indices = @transform_2, window_bounds = array<i64: 1, 128>}, {transform_indices = @transform_3, window_bounds = array<i64: 128, 128>}, {pipeline_mode = #tpu.pipeline_mode<synchronous>, transform_indices = @transform_4, window_bounds = array<i64: 1, 128>}, {transform_indices = @transform_5, window_bounds = array<i64: 16, 128>}]} {
    %c0_i32 = arith.constant 0 : i32
    %0 = arith.cmpi eq, %arg1, %c0_i32 : i32
    %1 = arith.extui %0 : i1 to i32
    %c0_i32_0 = arith.constant 0 : i32
    %2 = arith.cmpi ne, %1, %c0_i32_0 : i32
    scf.if %2 {
      %c0_16 = arith.constant 0 : index
      %c0_17 = arith.constant 0 : index
      %20 = vector.load %arg6[%c0_16, %c0_17] : memref<1x128xf32, #tpu.memory_space<vmem>>, vector<1x128xf32>
      %21 = vector.shape_cast %20 : vector<1x128xf32> to vector<1x128xf32>
      %22 = vector.broadcast %21 : vector<1x128xf32> to vector<16x128xf32>
      %c0_18 = arith.constant 0 : index
      %c0_19 = arith.constant 0 : index
      %23 = vector.load %arg8[%c0_18, %c0_19] : memref<16x128xf32, #tpu.memory_space<vmem>>, vector<16x128xf32>
      tpu.vector_store %arg8[%c0_18, %c0_19], %22 {strides = array<i32>} : memref<16x128xf32, #tpu.memory_space<vmem>>, vector<16x128xf32>,
    } else {
    }
    %c0 = arith.constant 0 : index
    %c0_1 = arith.constant 0 : index
    %3 = vector.load %arg2[%c0, %c0_1] : memref<16x128xbf16, #tpu.memory_space<vmem>>, vector<16x128xbf16>
    %c0_2 = arith.constant 0 : index
    %c0_3 = arith.constant 0 : index
    %4 = vector.load %arg3[%c0_2, %c0_3] : memref<128x128xbf16, #tpu.memory_space<vmem>>, vector<128x128xbf16>
    %cst = arith.constant dense<0.000000e+00> : vector<16x128xf32>
    %5 = tpu.matmul %3, %4, %cst {dimension_numbers = #tpu.dot_dimension_numbers<[1], [0], [0], [1], [0, 0, 1, 1], [], []>} : vector<16x128xbf16>, vector<128x128xbf16>, vector<16x128xf32> -> vector<16x128xf32>
    %c0_4 = arith.constant 0 : index
    %c0_5 = arith.constant 0 : index
    %6 = vector.load %arg4[%c0_4, %c0_5] : memref<1x128xf32, #tpu.memory_space<vmem>>, vector<1x128xf32>
    %7 = vector.broadcast %6 : vector<1x128xf32> to vector<16x128xf32>
    %8 = arith.addf %5, %7 : vector<16x128xf32>
    %cst_6 = arith.constant 0.000000e+00 : f32
    %9 = vector.broadcast %cst_6 : f32 to vector<16x128xf32>
    %10 = arith.maximumf %8, %9 : vector<16x128xf32>
    %11 = arith.truncf %10 : vector<16x128xf32> to vector<16x128xbf16>
    %c0_7 = arith.constant 0 : index
    %c0_8 = arith.constant 0 : index
    %12 = vector.load %arg8[%c0_7, %c0_8] : memref<16x128xf32, #tpu.memory_space<vmem>>, vector<16x128xf32>
    %c0_9 = arith.constant 0 : index
    %c0_10 = arith.constant 0 : index
    %13 = vector.load %arg5[%c0_9, %c0_10] : memref<128x128xbf16, #tpu.memory_space<vmem>>, vector<128x128xbf16>
    %cst_11 = arith.constant dense<0.000000e+00> : vector<16x128xf32>
    %14 = tpu.matmul %11, %13, %cst_11 {dimension_numbers = #tpu.dot_dimension_numbers<[1], [0], [0], [1], [0, 0, 1, 1], [], []>} : vector<16x128xbf16>, vector<128x128xbf16>, vector<16x128xf32> -> vector<16x128xf32>
    %15 = arith.addf %12, %14 : vector<16x128xf32>
    %c0_12 = arith.constant 0 : index
    %c0_13 = arith.constant 0 : index
    %16 = vector.load %arg8[%c0_12, %c0_13] : memref<16x128xf32, #tpu.memory_space<vmem>>, vector<16x128xf32>
    tpu.vector_store %arg8[%c0_12, %c0_13], %15 {strides = array<i32>} : memref<16x128xf32, #tpu.memory_space<vmem>>, vector<16x128xf32>,
    %c0_i32_14 = arith.constant 0 : i32
    %17 = arith.cmpi eq, %arg1, %c0_i32_14 : i32
    %18 = arith.extui %17 : i1 to i32
    %c0_i32_15 = arith.constant 0 : i32
    %19 = arith.cmpi ne, %18, %c0_i32_15 : i32
    scf.if %19 {
      %c0_16 = arith.constant 0 : index
      %c0_17 = arith.constant 0 : index
      %20 = vector.load %arg8[%c0_16, %c0_17] : memref<16x128xf32, #tpu.memory_space<vmem>>, vector<16x128xf32>
      %c0_18 = arith.constant 0 : index
      %c0_19 = arith.constant 0 : index
      %21 = vector.load %arg7[%c0_18, %c0_19] : memref<16x128xf32, #tpu.memory_space<vmem>>, vector<16x128xf32>
      tpu.vector_store %arg7[%c0_18, %c0_19], %20 {strides = array<i32>} : memref<16x128xf32, #tpu.memory_space<vmem>>, vector<16x128xf32>,
    } else {
    }
    return
  }
  func.func @transform_0(%arg0: i32, %arg1: i32) -> (i32, i32) {
    %c0_i32 = arith.constant 0 : i32
    %c0_i32_0 = arith.constant 0 : i32
    return %arg0, %c0_i32 : i32, i32
  }
  func.func @transform_1(%arg0: i32, %arg1: i32) -> (i32, i32) {
    %c0_i32 = arith.constant 0 : i32
    %c0_i32_0 = arith.constant 0 : i32
    return %c0_i32, %arg1 : i32, i32
  }
  func.func @transform_2(%arg0: i32, %arg1: i32) -> (i32, i32) {
    %c0_i32 = arith.constant 0 : i32
    %c0_i32_0 = arith.constant 0 : i32
    return %c0_i32, %arg1 : i32, i32
  }
  func.func @transform_3(%arg0: i32, %arg1: i32) -> (i32, i32) {
    %c0_i32 = arith.constant 0 : i32
    %c0_i32_0 = arith.constant 0 : i32
    return %arg1, %c0_i32 : i32, i32
  }
  func.func @transform_4(%arg0: i32, %arg1: i32) -> (i32, i32) {
    %c0_i32 = arith.constant 0 : i32
    %c0_i32_0 = arith.constant 0 : i32
    %c0_i32_1 = arith.constant 0 : i32
    return %c0_i32, %c0_i32_0 : i32, i32
  }
  func.func @transform_5(%arg0: i32, %arg1: i32) -> (i32, i32) {
    %c0_i32 = arith.constant 0 : i32
    %c0_i32_0 = arith.constant 0 : i32
    return %arg0, %c0_i32 : i32, i32
  }
}

</mosaic_0001>

<llo_original>
// kernel: tpu_custom_call.1
$region0: #{tpu_custom_call.1}
  #allocation0 [shape = 'u32[]', space=smem, size = 0x4, offset = 0x4, fixed_abs, tag = 'smem constant byte address 0x4 - core index']
  #allocation1 [shape = 'u32[72,128]{1,0:T(1,128)}', space=vmem, size = 0x9000, scoped, tag = 'internal scratch']
  #allocation2 [shape = 'f32[16,128]{1,0:T(8,128)}', space=vmem, size = 0x2000, scoped, tag = 'scratch operand']
  %s0 = inlined_call_operand.hbm [shape: bf16[16,128], index: 0, kind: input, shape index: {}]
  %s1 = inlined_call_operand.hbm [shape: bf16[128,128], index: 1, kind: input, shape index: {}]
  %s2 = inlined_call_operand.vmem [shape: f32[1,128], index: 2, kind: input, shape index: {}]
  %s3 = inlined_call_operand.hbm [shape: bf16[128,128], index: 3, kind: input, shape index: {}]
  %s4 = inlined_call_operand.vmem [shape: f32[1,128], index: 4, kind: input, shape index: {}]
  %s5 = inlined_call_operand.hbm [shape: f32[16,128], index: 5, kind: output, shape index: {}]
  %s6 = sld [smem:[#allocation0]]
  $region50: #{tpu_custom_call.1} parent=0
    _
  %s8 = ssub.s32 1, %s6
  %s9 = scalar_select 0, %s8, %s6
  $region1: #{tpu_custom_call.1} parent=0
    #allocation3 [shape = 'u8[4096]{0}', space=vmem, size = 0x1000, scoped, tag = 'input window, operand 0, single buffered']
    #allocation4 [shape = 's32[1]{0}', space=sflag, size = 0x4, scoped, tag = 'scoped memory for tpu_custom_call.1']
    #allocation5 [shape = 's32[1]{0}', space=sflag, size = 0x4, scoped, tag = 'scoped memory for tpu_custom_call.1']
    #allocation6 [shape = 'u8[32768]{0}', space=vmem, size = 0x8000, scoped, tag = 'input window, operand 1, single buffered']
    #allocation7 [shape = 's32[1]{0}', space=sflag, size = 0x4, scoped, tag = 'scoped memory for tpu_custom_call.1']
    #allocation8 [shape = 'u8[32768]{0}', space=vmem, size = 0x8000, scoped, tag = 'input window, operand 3, single buffered']
    #allocation9 [shape = 'u8[8192]{0}', space=vmem, size = 0x2000, scoped, tag = 'output window, operand 0, single buffered']
    %10 = vsyncpa [#allocation4], 0
    %11 = vsyncpa [#allocation7], 0
    %12 = vsyncpa [#allocation5], 0
    // Predicated region
    $region2: #{tpu_custom_call.1} parent=1 // pred_check
      _
    $region3: #{tpu_custom_call.1} parent=1 // pred_check_branch
      %14 = sbr.rel (0) target = $region5
    $region4: #{tpu_custom_call.1} parent=1 // pred_region
      %16 = vsyncadd [#allocation4], 0
      %s17 = sshll.u32 %s0, 4
      %s18 = int_to_ptr.hbm [resolvable:$true] %s17
      %s19 = sshll.u32 [#allocation3], 4
      %s20 = int_to_ptr.vmem [resolvable:$true] %s19
      %25 = dma.hbm_to_vmem [thread:$0]  %s18, 128, %s20, [#allocation4], 64, 64, 4
    $region5: #{tpu_custom_call.1} parent=1 // pred_fallthru
      _
    // Predicated region
    $region6: #{tpu_custom_call.1} parent=1 // pred_check
      _
    $region7: #{tpu_custom_call.1} parent=1 // pred_check_branch
      %27 = sbr.rel (0) target = $region9
    $region8: #{tpu_custom_call.1} parent=1 // pred_region
      %29 = vsyncadd [#allocation7], 0
      %s30 = sshll.u32 %s1, 4
      %s31 = int_to_ptr.hbm [resolvable:$true] %s30
      %s32 = sshll.u32 [#allocation6], 4
      %s33 = int_to_ptr.vmem [resolvable:$true] %s32
      %38 = dma.hbm_to_vmem [thread:$0]  %s31, 1024, %s33, [#allocation7], 64, 64, 4
    $region9: #{tpu_custom_call.1} parent=1 // pred_fallthru
      _
    // Predicated region
    $region10: #{tpu_custom_call.1} parent=1 // pred_check
      _
    $region11: #{tpu_custom_call.1} parent=1 // pred_check_branch
      %40 = sbr.rel (0) target = $region13
    $region12: #{tpu_custom_call.1} parent=1 // pred_region
      _
    $region13: #{tpu_custom_call.1} parent=1 // pred_fallthru
      _
    // Predicated region
    $region14: #{tpu_custom_call.1} parent=1 // pred_check
      _
    $region15: #{tpu_custom_call.1} parent=1 // pred_check_branch
      %42 = sbr.rel (0) target = $region17
    $region16: #{tpu_custom_call.1} parent=1 // pred_region
      %44 = vsyncadd [#allocation7], 0
      %s45 = sshll.u32 %s3, 4
      %s46 = int_to_ptr.hbm [resolvable:$true] %s45
      %s47 = sshll.u32 [#allocation8], 4
      %s48 = int_to_ptr.vmem [resolvable:$true] %s47
      %53 = dma.hbm_to_vmem [thread:$0]  %s46, 1024, %s48, [#allocation7], 64, 64, 4
    $region17: #{tpu_custom_call.1} parent=1 // pred_fallthru
      _
    // Predicated region
    $region18: #{tpu_custom_call.1} parent=1 // pred_check
      _
    $region19: #{tpu_custom_call.1} parent=1 // pred_check_branch
      %55 = sbr.rel (0) target = $region21
    $region20: #{tpu_custom_call.1} parent=1 // pred_region
      _
    $region21: #{tpu_custom_call.1} parent=1 // pred_fallthru
      _
    // Predicated region
    $region22: #{tpu_custom_call.1} parent=1 // pred_check
      _
    $region23: #{tpu_custom_call.1} parent=1 // pred_check_branch
      %57 = sbr.rel (0) target = $region25
    $region24: #{tpu_custom_call.1} parent=1 // pred_region
      %59 = dma.done [#allocation4], 128
    $region25: #{tpu_custom_call.1} parent=1 // pred_fallthru
      _
    // Predicated region
    $region26: #{tpu_custom_call.1} parent=1 // pred_check
      _
    $region27: #{tpu_custom_call.1} parent=1 // pred_check_branch
      %61 = sbr.rel (0) target = $region29
    $region28: #{tpu_custom_call.1} parent=1 // pred_region
      %63 = dma.done [#allocation7], 1024
    $region29: #{tpu_custom_call.1} parent=1 // pred_fallthru
      _
    // Predicated region
    $region30: #{tpu_custom_call.1} parent=1 // pred_check
      _
    $region31: #{tpu_custom_call.1} parent=1 // pred_check_branch
      %65 = sbr.rel (0) target = $region33
    $region32: #{tpu_custom_call.1} parent=1 // pred_region
      %67 = dma.done [#allocation7], 1024
    $region33: #{tpu_custom_call.1} parent=1 // pred_fallthru
      _
    %p68 = scmp.eq.s32.totalorder 0, 0
    // Predicated region
    $region34: #{tpu_custom_call.1} parent=1 // pred_check
      %p69 = pneg %p68
    $region35: #{tpu_custom_call.1} parent=1 // pred_check_branch
      %71 = sbr.rel (%p69) target = $region37
    $region36: #{tpu_custom_call.1} parent=1 // pred_region
      %v72 = vld [vmem:[%s4] sm:$0x1]
      %v74 = vperm.slane %v72, 0
      %76 = vst [vmem:[#allocation2] sm:$0xff] %v74
      %77 = vst [vmem:[#allocation2 + $0x8] sm:$0xff] %v74
    $region37: #{tpu_custom_call.1} parent=1 // pred_fallthru
      _
    %v78 = vld [vmem:[#allocation3] sm:$0xf]
    %v79 = vld [vmem:[#allocation3 + $0x4] sm:$0xf]
    %v80 = vld [vmem:[#allocation6] sm:$0xf]
    %v81 = vld [vmem:[#allocation6 + $0x4] sm:$0xf]
    %v82 = vld [vmem:[#allocation6 + $0x8] sm:$0xf]
    %v83 = vld [vmem:[#allocation6 + $0xc] sm:$0xf]
    %v84 = vld [vmem:[#allocation6 + $0x10] sm:$0xf]
    %v85 = vld [vmem:[#allocation6 + $0x14] sm:$0xf]
    %v86 = vld [vmem:[#allocation6 + $0x18] sm:$0xf]
    %v87 = vld [vmem:[#allocation6 + $0x1c] sm:$0xf]
    %v88 = vld [vmem:[#allocation6 + $0x20] sm:$0xf]
    %v89 = vld [vmem:[#allocation6 + $0x24] sm:$0xf]
    %v90 = vld [vmem:[#allocation6 + $0x28] sm:$0xf]
    %v91 = vld [vmem:[#allocation6 + $0x2c] sm:$0xf]
    %v92 = vld [vmem:[#allocation6 + $0x30] sm:$0xf]
    %v93 = vld [vmem:[#allocation6 + $0x34] sm:$0xf]
    %v94 = vld [vmem:[#allocation6 + $0x38] sm:$0xf]
    %v95 = vld [vmem:[#allocation6 + $0x3c] sm:$0xf]
    %v96 = vld [vmem:[%s2] sm:$0x1]
    %v98 = vperm.slane %v96, 0
    %v102 = vunpack.c.l.b16 %v78
    %v103 = vunpack.c.l.b16 %v79
    %v104 = vpack.c.b16 %v103, %v102
    %v122 = vunpack.c.l.b16 %v80
    %v123 = vunpack.c.l.b16 %v81
    %v124 = vunpack.c.l.b16 %v82
    %v125 = vunpack.c.l.b16 %v83
    %v126 = vunpack.c.l.b16 %v84
    %v127 = vunpack.c.l.b16 %v85
    %v128 = vunpack.c.l.b16 %v86
    %v129 = vunpack.c.l.b16 %v87
    %v130 = vunpack.c.l.b16 %v88
    %v131 = vunpack.c.l.b16 %v89
    %v132 = vunpack.c.l.b16 %v90
    %v133 = vunpack.c.l.b16 %v91
    %v134 = vunpack.c.l.b16 %v92
    %v135 = vunpack.c.l.b16 %v93
    %v136 = vunpack.c.l.b16 %v94
    %v137 = vunpack.c.l.b16 %v95
    %v138 = vpack.c.b16 %v123, %v122
    %v139 = vpack.c.b16 %v125, %v124
    %v140 = vpack.c.b16 %v127, %v126
    %v141 = vpack.c.b16 %v129, %v128
    %v142 = vpack.c.b16 %v131, %v130
    %v143 = vpack.c.b16 %v133, %v132
    %v144 = vpack.c.b16 %v135, %v134
    %v145 = vpack.c.b16 %v137, %v136
    %154 = vmatpush.bf16.msra.mxu0 %v145
    %155 = vmatpush.bf16.msra.mxu0 %v144
    %156 = vmatpush.bf16.msra.mxu0 %v143
    %157 = vmatpush.bf16.msra.mxu0 %v142
    %158 = vmatpush.bf16.msra.mxu0 %v141
    %159 = vmatpush.bf16.msra.mxu0 %v140
    %160 = vmatpush.bf16.msra.mxu0 %v139
    %161 = vmatpush.bf16.msra.mxu0 %v138
    %162 = vmatmul.bf16.gmra.mxu0 %v104
    %v163 = vpop.f32.mrf.mxu0
    %v164 = vadd.f32 %v98, %v163
    %v165 = vpop.f32.mrf.mxu0
    %v166 = vadd.f32 %v98, %v165
    %167 = vdwg.mxu0
    %v168 = vmax.f32 %v164, 0.0
    %v169 = vmax.f32 %v166, 0.0
    %v170 = vpack.c.bf16 %v169, %v168
    %v171 = vld [vmem:[#allocation2] sm:$0xff]
    %v172 = vld [vmem:[#allocation2 + $0x8] sm:$0xff]
    %v173 = vld [vmem:[#allocation8] sm:$0xf]
    %v174 = vld [vmem:[#allocation8 + $0x4] sm:$0xf]
    %v175 = vld [vmem:[#allocation8 + $0x8] sm:$0xf]
    %v176 = vld [vmem:[#allocation8 + $0xc] sm:$0xf]
    %v177 = vld [vmem:[#allocation8 + $0x10] sm:$0xf]
    %v178 = vld [vmem:[#allocation8 + $0x14] sm:$0xf]
    %v179 = vld [vmem:[#allocation8 + $0x18] sm:$0xf]
    %v180 = vld [vmem:[#allocation8 + $0x1c] sm:$0xf]
    %v181 = vld [vmem:[#allocation8 + $0x20] sm:$0xf]
    %v182 = vld [vmem:[#allocation8 + $0x24] sm:$0xf]
    %v183 = vld [vmem:[#allocation8 + $0x28] sm:$0xf]
    %v184 = vld [vmem:[#allocation8 + $0x2c] sm:$0xf]
    %v185 = vld [vmem:[#allocation8 + $0x30] sm:$0xf]
    %v186 = vld [vmem:[#allocation8 + $0x34] sm:$0xf]
    %v187 = vld [vmem:[#allocation8 + $0x38] sm:$0xf]
    %v188 = vld [vmem:[#allocation8 + $0x3c] sm:$0xf]
    %v205 = vunpack.c.l.b16 %v173
    %v206 = vunpack.c.l.b16 %v174
    %v207 = vunpack.c.l.b16 %v175
    %v208 = vunpack.c.l.b16 %v176
    %v209 = vunpack.c.l.b16 %v177
    %v210 = vunpack.c.l.b16 %v178
    %v211 = vunpack.c.l.b16 %v179
    %v212 = vunpack.c.l.b16 %v180
    %v213 = vunpack.c.l.b16 %v181
    %v214 = vunpack.c.l.b16 %v182
    %v215 = vunpack.c.l.b16 %v183
    %v216 = vunpack.c.l.b16 %v184
    %v217 = vunpack.c.l.b16 %v185
    %v218 = vunpack.c.l.b16 %v186
    %v219 = vunpack.c.l.b16 %v187
    %v220 = vunpack.c.l.b16 %v188
    %v221 = vpack.c.b16 %v206, %v205
    %v222 = vpack.c.b16 %v208, %v207
    %v223 = vpack.c.b16 %v210, %v209
    %v224 = vpack.c.b16 %v212, %v211
    %v225 = vpack.c.b16 %v214, %v213
    %v226 = vpack.c.b16 %v216, %v215
    %v227 = vpack.c.b16 %v218, %v217
    %v228 = vpack.c.b16 %v220, %v219
    %237 = vmatpush.bf16.msra.mxu0 %v228
    %238 = vmatpush.bf16.msra.mxu0 %v227
    %239 = vmatpush.bf16.msra.mxu0 %v226
    %240 = vmatpush.bf16.msra.mxu0 %v225
    %241 = vmatpush.bf16.msra.mxu0 %v224
    %242 = vmatpush.bf16.msra.mxu0 %v223
    %243 = vmatpush.bf16.msra.mxu0 %v222
    %244 = vmatpush.bf16.msra.mxu0 %v221
    %245 = vmatmul.bf16.gmra.mxu0 %v170
    %v246 = vpop.f32.mrf.mxu0
    %v247 = vadd.f32 0.0, %v246
    %v248 = vpop.f32.mrf.mxu0
    %v249 = vadd.f32 0.0, %v248
    %250 = vdwg.mxu0
    %v251 = vadd.f32 %v171, %v247
    %v252 = vadd.f32 %v172, %v249
    %253 = vst [vmem:[#allocation2] sm:$0xff] %v251
    %254 = vst [vmem:[#allocation2 + $0x8] sm:$0xff] %v252
    // Predicated region
    $region38: #{tpu_custom_call.1} parent=1 // pred_check
      %p255 = pneg %p68
    $region39: #{tpu_custom_call.1} parent=1 // pred_check_branch
      %257 = sbr.rel (%p255) target = $region41
    $region40: #{tpu_custom_call.1} parent=1 // pred_region
      %v258 = vld [vmem:[#allocation2] sm:$0xff]
      %v259 = vld [vmem:[#allocation2 + $0x8] sm:$0xff]
      %260 = vst [vmem:[#allocation9] sm:$0xff] %v258
      %261 = vst [vmem:[#allocation9 + $0x8] sm:$0xff] %v259
    $region41: #{tpu_custom_call.1} parent=1 // pred_fallthru
      _
    // Predicated region
    $region42: #{tpu_custom_call.1} parent=1 // pred_check
      _
    $region43: #{tpu_custom_call.1} parent=1 // pred_check_branch
      %263 = sbr.rel (0) target = $region45
    $region44: #{tpu_custom_call.1} parent=1 // pred_region
      %265 = vsyncadd [#allocation5], 0
      %s266 = sshll.u32 [#allocation9], 4
      %s267 = int_to_ptr.vmem [resolvable:$true] %s266
      %s268 = sshll.u32 %s5, 4
      %s269 = int_to_ptr.hbm [resolvable:$true] %s268
      %274 = dma.vmem_to_hbm [thread:$0]  %s267, 256, %s269, [#allocation5], 128, 128, 8
    $region45: #{tpu_custom_call.1} parent=1 // pred_fallthru
      _
    // Predicated region
    $region46: #{tpu_custom_call.1} parent=1 // pred_check
      _
    $region47: #{tpu_custom_call.1} parent=1 // pred_check_branch
      %276 = sbr.rel (0) target = $region49
    $region48: #{tpu_custom_call.1} parent=1 // pred_region
      %278 = dma.done [#allocation5], 256
    $region49: #{tpu_custom_call.1} parent=1 // pred_fallthru
      _
    %279 = vsyncpa [#allocation4], 1
    %280 = vsyncpa [#allocation7], 1
    %281 = vsyncpa [#allocation5], 1

</llo_original>
